<compile_context>
chip_gen: v6e
topology: v6e:2x2x1
jax: 0.10.0
libtpu: 0.0.40
codegen_flags: <defaults>
</compile_context>

<pallas_src>
import math

import jax
import jax.numpy as jnp
from jax.experimental import pallas as pl
from jax.experimental.pallas import tpu as pltpu


def _round_up(v, m):
    return ((v + m - 1) // m) * m


def _vmem_capacity_bytes():
    """Generation-aware VMEM capacity (falls back to the v7x 64 MiB floor)."""
    try:
        return int(pltpu.get_tpu_info().vmem_capacity_bytes)
    except Exception:
        return 64 * 1024 * 1024


def _choose_tiling(n, g_itemsize, vmem_cap):
    """Pick (tile_n, n_pad).

    Small graphs: one tile covering the (8-aligned) padded N.
    Large graphs: 128-multiple row tiles targeting 512 rows, bounded by a
    VMEM budget for the double-buffered (tile_n, n_pad) G block.
    """
    if n <= 512:
        tile_n = _round_up(n, 8)
        return tile_n, tile_n

    n_cols = _round_up(n, 128)
    g_budget = int(vmem_cap * 0.4)                      # G's share of VMEM
    budget_rows = g_budget // (2 * n_cols * max(g_itemsize, 1))
    tile_n = min(512, (budget_rows // 128) * 128)
    tile_n = max(tile_n, 128)
    n_pad = _round_up(n, tile_n)
    return tile_n, n_pad


def hgnn_conv_kernel(xw_ref, g_ref, o_ref):
    """One (batch, row-tile) grid step.

    xw_ref : (N_pad, f_pad)   precomputed dinv * (x @ W + b) for this batch
    g_ref  : (tile_n, N_pad)  raw (zero-padded) adjacency row tile
    o_ref  : (tile_n, f_pad)  output row tile
    """
    g = g_ref[...].astype(jnp.float32)

    # Row-wise D^-1/2 recomputed from the tile: row-sum -> XLU, rsqrt -> EUP,
    # both free under the MXU-dominated body.  Padded rows give deg == 0.
    deg = jnp.sum(g, axis=-1, keepdims=True)
    dinv_row = jnp.where(deg > 0.0, jax.lax.rsqrt(deg), 0.0)

    y = jnp.dot(g, xw_ref[...], preferred_element_type=jnp.float32)
    o_ref[...] = (dinv_row * y).astype(o_ref.dtype)


def hgnn_conv(x, G, weight, bias=None, *, dinv=None, tile_n=None):
    """HGNN_conv forward.

    x: (B, N, Fin), G: (B, N, N) non-negative, weight: (Fin, Fout),
    bias: (Fout,) or None, dinv: optional precomputed (B, N, 1) deg**-0.5
    (compute once per graph and reuse across layers).  Returns (B, N, Fout).
    """
    B, N, Fin = x.shape
    assert G.shape == (B, N, N)
    Fin_w, Fout = weight.shape
    assert Fin_w == Fin
    if bias is None:
        bias = jnp.zeros((Fout,), dtype=weight.dtype)

    # deg**-0.5 with the torch "inf -> 0" rule (guarded rsqrt; G >= 0).
    if dinv is None:
        deg = jnp.sum(G.astype(jnp.float32), axis=-1, keepdims=True)   # (B,N,1)
        dinv = jnp.where(deg > 0.0, jax.lax.rsqrt(deg), 0.0)
    dinv = dinv.astype(jnp.float32)

    # Lane-dense output: pad Fout to a multiple of 128, slice after the call.
    f_pad = _round_up(Fout, 128)
    w_p = jnp.pad(weight.astype(jnp.float32), ((0, 0), (0, f_pad - Fout)))
    b_p = jnp.pad(bias.astype(jnp.float32), (0, f_pad - Fout))

    # Precompute xw' = dinv * (x @ W + b) in plain XLA (O(N*F) work/traffic,
    # negligible next to the O(N^2) G stream the kernel is bound on).
    xw = jnp.einsum("bnf,fo->bno", x.astype(jnp.float32), w_p) + b_p
    xw = dinv * xw                                                     # (B,N,f_pad)

    # Tiling + N padding (padded rows/cols are zero -> deg 0 -> dinv 0).
    vmem_cap = _vmem_capacity_bytes()
    if tile_n is None:
        tile_n, n_pad = _choose_tiling(N, G.dtype.itemsize, vmem_cap)
    else:
        tile_n = _round_up(int(tile_n), 8)
        n_pad = _round_up(N, tile_n)
    num_row_tiles = n_pad // tile_n

    if n_pad != N:
        G_p = jnp.pad(G, ((0, 0), (0, n_pad - N), (0, n_pad - N)))
        xw_p = jnp.pad(xw, ((0, 0), (0, n_pad - N), (0, 0)))
    else:
        G_p, xw_p = G, xw

    # VMEM footprint (double-buffered blocks) -> scoped limit, clamped to the
    # physical capacity of this generation (<= ~7/8 of VMEM on v7x's 64 MiB).
    est = (
        2 * n_pad * f_pad * 4                              # xw (per batch)
        + 2 * tile_n * n_pad * max(G_p.dtype.itemsize, 4)  # G row tile
        + 2 * tile_n * f_pad * 4                           # out tile
        + tile_n * f_pad * 4                               # f32 temporaries
    )
    vmem_limit = int(min(max(est * 3 // 2, 16 * 1024 * 1024), vmem_cap * 7 // 8))

    out = pl.pallas_call(
        hgnn_conv_kernel,
        out_shape=jax.ShapeDtypeStruct((B, n_pad, f_pad), x.dtype),
        grid_spec=pltpu.PrefetchScalarGridSpec(
            num_scalar_prefetch=0,
            grid=(B, num_row_tiles),
            in_specs=[
                # xw': per-batch resident block (squeezed batch dim).
                pl.BlockSpec((None, n_pad, f_pad), lambda b, i: (b, 0, 0)),
                # G: streamed row tile (squeezed batch dim).
                pl.BlockSpec((None, tile_n, n_pad), lambda b, i: (b, i, 0)),
            ],
            out_specs=pl.BlockSpec((None, tile_n, f_pad), lambda b, i: (b, i, 0)),
        ),
        compiler_params=pltpu.CompilerParams(
            # No scratch / cross-iteration state -> both axes megacore-shardable.
            dimension_semantics=("parallel", "parallel"),
            vmem_limit_bytes=vmem_limit,
        ),
    )(xw_p, G_p)

    return out[:, :N, :Fout]


def reference(x, G, weight, bias):
    xw = jnp.einsum("bnf,fo->bno", x, weight) + bias
    deg = jnp.sum(G, axis=2, keepdims=True)
    dinv = deg ** (-0.5)
    dinv = jnp.where(dinv == jnp.inf, 0.0, dinv)
    Gn = dinv * G * jnp.swapaxes(dinv, 1, 2)
    return jnp.einsum("bnm,bmo->bno", Gn, xw)


if __name__ == "__main__":
    B, N, Fin, Fout = 2, 40, 32, 32

    key = jax.random.PRNGKey(0)
    kx, kg, kw, kb = jax.random.split(key, 4)

    x = jax.random.normal(kx, (B, N, Fin), dtype=jnp.float32)

    # Non-negative adjacency with a zero-degree row to exercise the
    # inf -> 0 path of degree ** -0.5.
    G = jax.random.uniform(kg, (B, N, N), dtype=jnp.float32)
    G = jnp.where(G > 0.4, G, 0.0)
    G = G.at[:, 0, :].set(0.0)   # row 0 has zero degree in every batch

    # Kaiming-uniform-style init matching HGNN_conv.reset_parameters shapes.
    fan_in = Fout  # torch fan_in for a 2-D (in_ft, out_ft) tensor is size(1)
    bound = math.sqrt(2.0) * math.sqrt(3.0 / fan_in)
    weight = jax.random.uniform(
        kw, (Fin, Fout), dtype=jnp.float32, minval=-bound, maxval=bound)
    bias = 0.1 * jax.random.normal(kb, (Fout,), dtype=jnp.float32)

    ref = reference(x, G, weight, bias)

    # 1) Forced small tile: exercises N padding (40 -> 48) + multi-row-tile grid.
    out = hgnn_conv(x, G, weight, bias, tile_n=16)
    out = jax.block_until_ready(out)
    assert out.shape == (B, N, Fout)
    assert jnp.allclose(out, ref, atol=1e-4, rtol=1e-4), "mismatch (tiled) vs reference"

    # 2) Auto tiling: single-tile small-graph path.
    out2 = hgnn_conv(x, G, weight, bias)
    out2 = jax.block_until_ready(out2)
    assert out2.shape == (B, N, Fout)
    assert jnp.allclose(out2, ref, atol=1e-4, rtol=1e-4), "mismatch (auto) vs reference"

    print("KERNEL_OK")
</pallas_src>

<mosaic_0001>
module attributes {stable_mosaic.version = 11 : i64} {
  func.func @hgnn_conv_kernel(%arg0: i32, %arg1: i32, %arg2: memref<1x48x128xf32, #tpu.memory_space<vmem>>, %arg3: memref<1x16x48xf32, #tpu.memory_space<vmem>>, %arg4: memref<1x16x128xf32, #tpu.memory_space<vmem>>) attributes {dimension_semantics = [#tpu.dimension_semantics<parallel>, #tpu.dimension_semantics<parallel>], iteration_bounds = array<i64: 2, 3>, scalar_prefetch = 0 : i64, scratch_operands = 0 : i64, tpu.core_type = #tpu.core_type<tc>, window_params = [{transform_indices = @transform_0, window_bounds = array<i64: 1, 48, 128>}, {transform_indices = @transform_1, window_bounds = array<i64: 1, 16, 48>}, {transform_indices = @transform_2, window_bounds = array<i64: 1, 16, 128>}]} {
    %c0 = arith.constant 0 : index
    %c0_0 = arith.constant 0 : index
    %c0_1 = arith.constant 0 : index
    %0 = vector.load %arg3[%c0, %c0_0, %c0_1] : memref<1x16x48xf32, #tpu.memory_space<vmem>>, vector<1x16x48xf32>
    %1 = vector.shape_cast %0 : vector<1x16x48xf32> to vector<16x48xf32>
    %cst = arith.constant dense<0.000000e+00> : vector<16xf32>
    %2 = vector.multi_reduction <add>, %1, %cst [1] : vector<16x48xf32> to vector<16xf32>
    %3 = vector.shape_cast %2 : vector<16xf32> to vector<16x1xf32>
    %cst_2 = arith.constant 0.000000e+00 : f32
    %4 = vector.broadcast %cst_2 : f32 to vector<16x1xf32>
    %5 = arith.cmpf ogt, %3, %4 : vector<16x1xf32>
    %6 = math.rsqrt %3 : vector<16x1xf32>
    %cst_3 = arith.constant 0.000000e+00 : f32
    %7 = vector.broadcast %cst_3 : f32 to vector<16x1xf32>
    %8 = arith.select %5, %6, %7 : vector<16x1xi1>, vector<16x1xf32>
    %c0_4 = arith.constant 0 : index
    %c0_5 = arith.constant 0 : index
    %c0_6 = arith.constant 0 : index
    %9 = vector.load %arg2[%c0_4, %c0_5, %c0_6] : memref<1x48x128xf32, #tpu.memory_space<vmem>>, vector<1x48x128xf32>
    %10 = vector.shape_cast %9 : vector<1x48x128xf32> to vector<48x128xf32>
    %cst_7 = arith.constant dense<0.000000e+00> : vector<16x128xf32>
    %11 = tpu.matmul %1, %10, %cst_7 {dimension_numbers = #tpu.dot_dimension_numbers<[1], [0], [0], [1], [0, 0, 1, 1], [], []>} : vector<16x48xf32>, vector<48x128xf32>, vector<16x128xf32> -> vector<16x128xf32>
    %12 = vector.broadcast %8 : vector<16x1xf32> to vector<16x128xf32>
    %13 = arith.mulf %12, %11 : vector<16x128xf32>
    %c0_8 = arith.constant 0 : index
    %c0_9 = arith.constant 0 : index
    %c0_10 = arith.constant 0 : index
    %14 = vector.load %arg4[%c0_8, %c0_9, %c0_10] : memref<1x16x128xf32, #tpu.memory_space<vmem>>, vector<1x16x128xf32>
    %15 = vector.shape_cast %14 : vector<1x16x128xf32> to vector<16x128xf32>
    %16 = vector.shape_cast %13 : vector<16x128xf32> to vector<1x16x128xf32>
    tpu.vector_store %arg4[%c0_8, %c0_9, %c0_10], %16 {strides = array<i32>} : memref<1x16x128xf32, #tpu.memory_space<vmem>>, vector<1x16x128xf32>,
    return
  }
  func.func @transform_0(%arg0: i32, %arg1: i32) -> (i32, i32, i32) {
    %c0_i32 = arith.constant 0 : i32
    %c0_i32_0 = arith.constant 0 : i32
    %c0_i32_1 = arith.constant 0 : i32
    return %arg0, %c0_i32, %c0_i32_0 : i32, i32, i32
  }
  func.func @transform_1(%arg0: i32, %arg1: i32) -> (i32, i32, i32) {
    %c0_i32 = arith.constant 0 : i32
    %c0_i32_0 = arith.constant 0 : i32
    return %arg0, %arg1, %c0_i32 : i32, i32, i32
  }
  func.func @transform_2(%arg0: i32, %arg1: i32) -> (i32, i32, i32) {
    %c0_i32 = arith.constant 0 : i32
    %c0_i32_0 = arith.constant 0 : i32
    return %arg0, %arg1, %c0_i32 : i32, i32, i32
  }
}

</mosaic_0001>

<llo_original>
// kernel: tpu_custom_call.1
$region0: #{tpu_custom_call.1}
  #allocation0 [shape = 'u32[]', space=smem, size = 0x4, offset = 0x4, fixed_abs, tag = 'smem constant byte address 0x4 - core index']
  #allocation1 [shape = 'u32[144,128]{1,0:T(1,128)}', space=vmem, size = 0x12000, scoped, tag = 'internal scratch']
  %s0 = inlined_call_operand.hbm [shape: f32[2,48,128], index: 0, kind: input, shape index: {}]
  %s1 = inlined_call_operand.hbm [shape: f32[2,48,48], index: 1, kind: input, shape index: {}]
  %s2 = inlined_call_operand.hbm [shape: f32[2,48,128], index: 2, kind: output, shape index: {}]
  %s3 = sld [smem:[#allocation0]]
  $region49: #{tpu_custom_call.1} parent=0
    _
  %s5 = ssub.s32 1, %s3
  %s6 = scalar_select 0, %s5, %s3
  $region1: #{tpu_custom_call.1} parent=0
    #allocation2 [shape = 'u8[49152]{0}', space=vmem, size = 0xc000, scoped, tag = 'input window, operand 0']
    #allocation3 [shape = 's32[2]{0}', space=sflag, size = 0x8, scoped, tag = 'scoped memory for tpu_custom_call.1']
    #allocation4 [shape = 's32[2]{0}', space=sflag, size = 0x8, scoped, tag = 'scoped memory for tpu_custom_call.1']
    #allocation5 [shape = 'u8[16384]{0}', space=vmem, size = 0x4000, scoped, tag = 'input window, operand 1']
    #allocation6 [shape = 's32[2]{0}', space=sflag, size = 0x8, scoped, tag = 'scoped memory for tpu_custom_call.1']
    #allocation7 [shape = 'u8[16384]{0}', space=vmem, size = 0x4000, scoped, tag = 'output window, operand 0']
    %7 = vsyncpa [#allocation3], 0
    %s8 = scalar_lea.sflag [#allocation3], 1
    %9 = vsyncpa %s8, 0
    %10 = vsyncpa [#allocation6], 0
    %s11 = scalar_lea.sflag [#allocation6], 1
    %12 = vsyncpa %s11, 0
    %13 = vsyncpa [#allocation4], 0
    %s14 = scalar_lea.sflag [#allocation4], 1
    %15 = vsyncpa %s14, 0
    loop: start=0, step=1, limit=8
    $region2: #{tpu_custom_call.1} parent=1 // loop_pre_header
      _
    $region3: #{tpu_custom_call.1} parent=1 // loop_header
      %s17 = sphi 0, %s21
      %p18 = scmp.ge.s32.totalorder %s17, 8
      %s24 = sphi 0, %s36
      %s25 = sphi 0, %s32
      %s26 = sphi 0, %s24
      %s27 = sphi 0, %s25
      %s28 = sphi 0, %s26
      %s29 = sphi 0, %s27
      %s39 = sphi 0, %s41
      %s42 = sphi 0, %s39
      %s43 = sphi 0, %s42
      %s59 = sphi 0, %s43
      %s67 = sphi 0, %s69
      %s70 = sphi 0, %s67
      %s71 = sphi 0, %s70
      %s87 = sphi 0, %s71
      %s95 = sphi 0, %s97
      %s98 = sphi 0, %s95
      %s99 = sphi 0, %s98
      %s115 = sphi 0, %s99
    $region4: #{tpu_custom_call.1} parent=1 // loop_header_branch
      %20 = sbr.rel (%p18) target = $region8
    $region5: #{tpu_custom_call.1} parent=1 // loop_body
      %s22 = ssub.s32 %s17, 1
      %s23 = ssub.s32 %s17, 2
      %s30 = sadd.s32 1, %s25
      %p31 = scmp.ge.s32.totalorder %s30, 3
      %s32 = scalar_select %p31, 0, %s30
      %s33 = sadd.s32 1, %s24
      %s34 = scalar_select %p31, %s33, %s24
      %p35 = scmp.ge.s32.totalorder %s34, 2
      %s36 = scalar_select %p35, 0, %s34
      %s37 = ssub.s32 %s24, %s36
      %p38 = scmp.eq.s32.totalorder %s37, 0
      %s40 = sadd.s32 %s39, 1
      %s41 = scalar_select %p38, %s39, %s40
      %p44 = pneg %p38
      %p45 = scmp.eq.s32.totalorder %s17, 5
      %p46 = por %p44, %p45
      %p47 = scmp.ne.s32.totalorder %s39, %s42
      %p48 = scmp.eq.s32.totalorder %s17, 0
      %p49 = por %p47, %p48
      %p50 = scmp.ne.s32.totalorder %s39, %s42
      %p51 = scmp.eq.s32.totalorder %s22, 5
      %p52 = por %p50, %p51
      %p53 = scmp.ne.s32.totalorder %s42, %s43
      %p54 = scmp.eq.s32.totalorder %s22, 0
      %p55 = por %p53, %p54
      %p56 = scmp.ne.s32.totalorder %s42, %s43
      %p57 = scmp.eq.s32.totalorder %s23, 5
      %p58 = por %p56, %p57
      %p60 = scmp.ne.s32.totalorder %s43, %s59
      %p61 = scmp.eq.s32.totalorder %s23, 0
      %p62 = por %p60, %p61
      %s63 = ssub.s32 %s24, %s36
      %s64 = ssub.s32 %s25, %s32
      %s65 = sor.u32 %s63, %s64
      %p66 = scmp.eq.s32.totalorder %s65, 0
      %s68 = sadd.s32 %s67, 1
      %s69 = scalar_select %p66, %s67, %s68
      %p72 = pneg %p66
      %p73 = scmp.eq.s32.totalorder %s17, 5
      %p74 = por %p72, %p73
      %p75 = scmp.ne.s32.totalorder %s67, %s70
      %p76 = scmp.eq.s32.totalorder %s17, 0
      %p77 = por %p75, %p76
      %p78 = scmp.ne.s32.totalorder %s67, %s70
      %p79 = scmp.eq.s32.totalorder %s22, 5
      %p80 = por %p78, %p79
      %p81 = scmp.ne.s32.totalorder %s70, %s71
      %p82 = scmp.eq.s32.totalorder %s22, 0
      %p83 = por %p81, %p82
      %p84 = scmp.ne.s32.totalorder %s70, %s71
      %p85 = scmp.eq.s32.totalorder %s23, 5
      %p86 = por %p84, %p85
      %p88 = scmp.ne.s32.totalorder %s71, %s87
      %p89 = scmp.eq.s32.totalorder %s23, 0
      %p90 = por %p88, %p89
      %s91 = ssub.s32 %s24, %s36
      %s92 = ssub.s32 %s25, %s32
      %s93 = sor.u32 %s91, %s92
      %p94 = scmp.eq.s32.totalorder %s93, 0
      %s96 = sadd.s32 %s95, 1
      %s97 = scalar_select %p94, %s95, %s96
      %p100 = pneg %p94
      %p101 = scmp.eq.s32.totalorder %s17, 5
      %p102 = por %p100, %p101
      %p103 = scmp.ne.s32.totalorder %s95, %s98
      %p104 = scmp.eq.s32.totalorder %s17, 0
      %p105 = por %p103, %p104
      %p106 = scmp.ne.s32.totalorder %s95, %s98
      %p107 = scmp.eq.s32.totalorder %s22, 5
      %p108 = por %p106, %p107
      %p109 = scmp.ne.s32.totalorder %s98, %s99
      %p110 = scmp.eq.s32.totalorder %s22, 0
      %p111 = por %p109, %p110
      %p112 = scmp.ne.s32.totalorder %s98, %s99
      %p113 = scmp.eq.s32.totalorder %s23, 5
      %p114 = por %p112, %p113
      %p116 = scmp.ne.s32.totalorder %s99, %s115
      %p117 = scmp.eq.s32.totalorder %s23, 0
      %p118 = por %p116, %p117
      %p119 = scmp.le.s32.totalorder 1, %s17
      %p120 = scmp.lt.s32.totalorder %s17, 7
      %p121 = pnand %p119, %p120
      %p122 = pneg %p121
      // Predicated region
      $region9: #{tpu_custom_call.1} parent=5 // pred_check
        _
      $region10: #{tpu_custom_call.1} parent=5 // pred_check_branch
        %124 = sbr.rel (%p121) target = $region12
      $region11: #{tpu_custom_call.1} parent=5 // pred_region
        %s125 = ssub.s32 %s17, 1
      $region12: #{tpu_custom_call.1} parent=5 // pred_fallthru
        _
      %p126 = scmp.lt.s32.totalorder %s17, 6
      // Predicated region
      $region13: #{tpu_custom_call.1} parent=5 // pred_check
        %p127 = pneg %p126
      $region14: #{tpu_custom_call.1} parent=5 // pred_check_branch
        %129 = sbr.rel (%p127) target = $region16
      $region15: #{tpu_custom_call.1} parent=5 // pred_region
        // Predicated region
        $region17: #{tpu_custom_call.1} parent=15 // pred_check
          %p130 = pneg %p49
        $region18: #{tpu_custom_call.1} parent=15 // pred_check_branch
          %132 = sbr.rel (%p130) target = $region20
        $region19: #{tpu_custom_call.1} parent=15 // pred_region
          %s133 = sand.u32 %s39, 1
          %s134 = scalar_lea.sflag [#allocation3], %s133
          %s135 = sand.u32 %s39, 1
          %s136 = smul.addr %s135, 48
          %s137 = scalar_lea.vmem [#allocation2], %s136
          %s139 = ssub.s32 768, 768
          %140 = vsyncadd %s134, %s139
          %s141 = smul.addr %s24, 6
          %s142 = smul.addr %s141, 128
          %s143 = scalar_lea.hbm %s0, %s142
          %s144 = sshll.u32 %s137, 4
          %s145 = int_to_ptr.vmem [resolvable:$true] %s144
          %150 = dma.hbm_to_vmem [thread:$0]  %s143, 768, %s145, %s134, 128, 128, 8
        $region20: #{tpu_custom_call.1} parent=15 // pred_fallthru
          _
        // Predicated region
        $region21: #{tpu_custom_call.1} parent=15 // pred_check
          %p151 = pneg %p77
        $region22: #{tpu_custom_call.1} parent=15 // pred_check_branch
          %153 = sbr.rel (%p151) target = $region24
        $region23: #{tpu_custom_call.1} parent=15 // pred_region
          %s154 = sand.u32 %s67, 1
          %s155 = scalar_lea.sflag [#allocation6], %s154
          %s156 = sand.u32 %s67, 1
          %s157 = smul.addr %s156, 16
          %s158 = scalar_lea.vmem [#allocation5], %s157
          %s159 = smul.u32 2, %s25
          %s161 = ssub.s32 256, 256
          %162 = vsyncadd %s155, %s161
          %s163 = smul.addr %s24, 6
          %s164 = sadd.s32 %s159, %s163
          %s165 = smul.addr %s164, 128
          %s166 = scalar_lea.hbm %s1, %s165
          %s167 = sshll.u32 %s158, 4
          %s168 = int_to_ptr.vmem [resolvable:$true] %s167
          %173 = dma.hbm_to_vmem [thread:$0]  %s166, 256, %s168, %s155, 128, 128, 8
        $region24: #{tpu_custom_call.1} parent=15 // pred_fallthru
          _
      $region16: #{tpu_custom_call.1} parent=5 // pred_fallthru
        _
      %p174 = scmp.le.s32.totalorder 1, %s17
      %p175 = scmp.lt.s32.totalorder %s17, 7
      %p176 = pnand %p174, %p175
      %p177 = pneg %p176
      // Predicated region
      $region25: #{tpu_custom_call.1} parent=5 // pred_check
        _
      $region26: #{tpu_custom_call.1} parent=5 // pred_check_branch
        %179 = sbr.rel (%p176) target = $region28
      $region27: #{tpu_custom_call.1} parent=5 // pred_region
        %s180 = ssub.s32 %s17, 1
        %s181 = sand.u32 %s42, 1
        %s182 = scalar_lea.sflag [#allocation3], %s181
        %s183 = sand.u32 %s42, 1
        %s184 = smul.addr %s183, 48
        %s185 = scalar_lea.vmem [#allocation2], %s184
        // Predicated region
        $region29: #{tpu_custom_call.1} parent=27 // pred_check
          %p186 = pneg %p55
        $region30: #{tpu_custom_call.1} parent=27 // pred_check_branch
          %188 = sbr.rel (%p186) target = $region32
        $region31: #{tpu_custom_call.1} parent=27 // pred_region
          %189 = dma.done %s182, 768
        $region32: #{tpu_custom_call.1} parent=27 // pred_fallthru
          _
        %s190 = sand.u32 %s70, 1
        %s191 = scalar_lea.sflag [#allocation6], %s190
        %s192 = sand.u32 %s70, 1
        %s193 = smul.addr %s192, 16
        %s194 = scalar_lea.vmem [#allocation5], %s193
        // Predicated region
        $region33: #{tpu_custom_call.1} parent=27 // pred_check
          %p195 = pneg %p83
        $region34: #{tpu_custom_call.1} parent=27 // pred_check_branch
          %197 = sbr.rel (%p195) target = $region36
        $region35: #{tpu_custom_call.1} parent=27 // pred_region
          %198 = dma.done %s191, 256
        $region36: #{tpu_custom_call.1} parent=27 // pred_fallthru
          _
        %s199 = sand.u32 %s42, 1
        %s200 = scalar_lea.sflag [#allocation3], %s199
        %s201 = sand.u32 %s42, 1
        %s202 = smul.addr %s201, 48
        %s203 = scalar_lea.vmem [#allocation2], %s202
        %p204 = pneg %p55
        %p205 = pneg %p52
        %s206 = sand.u32 %s70, 1
        %s207 = scalar_lea.sflag [#allocation6], %s206
        %s208 = sand.u32 %s70, 1
        %s209 = smul.addr %s208, 16
        %s210 = scalar_lea.vmem [#allocation5], %s209
        %p211 = pneg %p83
        %p212 = pneg %p80
        %p213 = pneg %p111
        %p214 = pneg %p108
        %s215 = sand.u32 %s98, 1
        %s216 = scalar_lea.sflag [#allocation4], %s215
        %s217 = sand.u32 %s98, 1
        %s218 = smul.addr %s217, 16
        %s219 = scalar_lea.vmem [#allocation7], %s218
        %s220 = smul.u32 2, %s27
        %s221 = smul.u32 2, %s27
        %v222 = vld [vmem:[%s194] sm:$0xff]
        %v223 = vld [vmem:[%s194 + $0x8] sm:$0xff]
        %vm224 = vcmask 392192
        %v225 = vsel %vm224, %v222, 0.0
        %226 = vadd.xlane.f32.xlu0 %v225
        %v227 = vpop.xlane.xlu0 %226
        %v228 = vsel %vm224, %v223, 0.0
        %229 = vadd.xlane.f32.xlu0 %v228
        %v230 = vpop.xlane.xlu0 %229
        %vm231 = vcmp.gt.f32.partialorder %v227, 0.0
        %vm232 = vcmp.gt.f32.partialorder %v230, 0.0
        %v233 = vrsqrt.pop %v227
        %v234 = vrsqrt.pop %v230
        %v235 = vsel %vm231, %v233, 0.0
        %v236 = vsel %vm232, %v234, 0.0
        %v237 = vld [vmem:[%s185] sm:$0xff]
        %v238 = vld [vmem:[%s185 + $0x8] sm:$0xff]
        %v239 = vld [vmem:[%s185 + $0x10] sm:$0xff]
        %v240 = vld [vmem:[%s185 + $0x18] sm:$0xff]
        %v241 = vld [vmem:[%s185 + $0x20] sm:$0xff]
        %v242 = vld [vmem:[%s185 + $0x28] sm:$0xff]
        %v244 = vsel %vm224, %v222, 0
        %v247 = vsel %vm224, %v223, 0
        %249 = vmatprep.subr.mxu0 0.0
        %250 = vmatpush1.msra.mxu0 0.0
        %251 = vmatprep.subr.mxu0 0.0
        %252 = vmatpush1.msra.mxu0 0.0
        %253 = vmatprep.subr.mxu0 0.0
        %254 = vmatpush1.msra.mxu0 0.0
        %255 = vmatprep.subr.mxu0 0.0
        %256 = vmatpush1.msra.mxu0 0.0
        %257 = vmatprep.subr.mxu0 0.0
        %258 = vmatpush1.msra.mxu0 0.0
        %259 = vmatprep.subr.mxu0 0.0
        %260 = vmatpush1.msra.mxu0 0.0
        %261 = vmatprep.subr.mxu0 0.0
        %262 = vmatpush1.msra.mxu0 0.0
        %263 = vmatprep.subr.mxu0 0.0
        %264 = vmatpush1.msra.mxu0 0.0
        %265 = vmatprep.subr.mxu0 0.0
        %266 = vmatpush1.msra.mxu0 0.0
        %267 = vmatprep.subr.mxu0 0.0
        %268 = vmatpush1.msra.mxu0 0.0
        %269 = vmatprep.subr.mxu0 0.0
        %270 = vmatpush1.msra.mxu0 %v242
        %271 = vmatprep.subr.mxu0 0.0
        %272 = vmatpush1.msra.mxu0 %v241
        %273 = vmatprep.subr.mxu0 0.0
        %274 = vmatpush1.msra.mxu0 %v240
        %275 = vmatprep.subr.mxu0 0.0
        %276 = vmatpush1.msra.mxu0 %v239
        %277 = vmatprep.subr.mxu0 0.0
        %278 = vmatpush1.msra.mxu0 %v238
        %279 = vmatprep.subr.mxu0 0.0
        %280 = vmatpush1.msra.mxu0 %v237
        %281 = vmatprep.subr.mxu0 0.0
        %282 = vmatpush2.msra.mxu0 0.0
        %283 = vmatprep.subr.mxu0 0.0
        %284 = vmatpush2.msra.mxu0 0.0
        %285 = vmatprep.subr.mxu0 0.0
        %286 = vmatpush2.msra.mxu0 0.0
        %287 = vmatprep.subr.mxu0 0.0
        %288 = vmatpush2.msra.mxu0 0.0
        %289 = vmatprep.subr.mxu0 0.0
        %290 = vmatpush2.msra.mxu0 0.0
        %291 = vmatprep.subr.mxu0 0.0
        %292 = vmatpush2.msra.mxu0 0.0
        %293 = vmatprep.subr.mxu0 0.0
        %294 = vmatpush2.msra.mxu0 0.0
        %295 = vmatprep.subr.mxu0 0.0
        %296 = vmatpush2.msra.mxu0 0.0
        %297 = vmatprep.subr.mxu0 0.0
        %298 = vmatpush2.msra.mxu0 0.0
        %299 = vmatprep.subr.mxu0 0.0
        %300 = vmatpush2.msra.mxu0 0.0
        %301 = vmatprep.subr.mxu0 0.0
        %302 = vmatpush2.msra.mxu0 0.0
        %303 = vmatprep.subr.mxu0 0.0
        %304 = vmatpush2.msra.mxu0 0.0
        %305 = vmatprep.subr.mxu0 0.0
        %306 = vmatpush2.msra.mxu0 0.0
        %307 = vmatprep.subr.mxu0 0.0
        %308 = vmatpush2.msra.mxu0 0.0
        %309 = vmatprep.subr.mxu0 0.0
        %310 = vmatpush2.msra.mxu0 0.0
        %311 = vmatprep.subr.mxu0 0.0
        %312 = vmatpush2.msra.mxu0 0.0
        %313 = vmatprep.mubr.f32.mxu0 0.0
        %314 = vmatmul.mubr.f32.gmra.mxu0 %v244
        %v315 = vpop.f32.mrf.mxu0
        %v316 = vadd.f32 0.0, %v315
        %v317 = vpop.f32.mrf.mxu0
        %318 = vmatprep.mubr.f32.mxu0 0.0
        %319 = vmatmul.mubr.f32.gmra.mxu0 %v247
        %v320 = vpop.f32.mrf.mxu0
        %v321 = vadd.f32 0.0, %v320
        %v322 = vpop.f32.mrf.mxu0
        %323 = vdwg.mxu0
        %v324 = vmul.f32 %v235, %v316
        %v325 = vmul.f32 %v236, %v321
        %326 = vst [vmem:[%s219] sm:$0xff] %v324
        %327 = vst [vmem:[%s219 + $0x8] sm:$0xff] %v325
        %s328 = sand.u32 %s98, 1
        %s329 = scalar_lea.sflag [#allocation4], %s328
        %s330 = sand.u32 %s98, 1
        %s331 = smul.addr %s330, 16
        %s332 = scalar_lea.vmem [#allocation7], %s331
        // Predicated region
        $region37: #{tpu_custom_call.1} parent=27 // pred_check
          %p333 = pneg %p108
        $region38: #{tpu_custom_call.1} parent=27 // pred_check_branch
          %335 = sbr.rel (%p333) target = $region40
        $region39: #{tpu_custom_call.1} parent=27 // pred_region
          %s336 = smul.u32 2, %s27
          %s338 = ssub.s32 256, 256
          %339 = vsyncadd %s329, %s338
          %s340 = smul.addr %s26, 6
          %s341 = sadd.s32 %s336, %s340
          %s342 = smul.addr %s341, 128
          %s343 = scalar_lea.hbm %s2, %s342
          %s344 = sshll.u32 %s332, 4
          %s345 = int_to_ptr.vmem [resolvable:$true] %s344
          %350 = dma.vmem_to_hbm [thread:$0]  %s345, 256, %s343, %s329, 128, 128, 8
        $region40: #{tpu_custom_call.1} parent=27 // pred_fallthru
          _
      $region28: #{tpu_custom_call.1} parent=5 // pred_fallthru
        _
      %p351 = scmp.le.s32.totalorder 2, %s17
      // Predicated region
      $region41: #{tpu_custom_call.1} parent=5 // pred_check
        %p352 = pneg %p351
      $region42: #{tpu_custom_call.1} parent=5 // pred_check_branch
        %354 = sbr.rel (%p352) target = $region44
      $region43: #{tpu_custom_call.1} parent=5 // pred_region
        %s355 = ssub.s32 %s17, 2
        // Predicated region
        $region45: #{tpu_custom_call.1} parent=43 // pred_check
          %p356 = pneg %p114
        $region46: #{tpu_custom_call.1} parent=43 // pred_check_branch
          %358 = sbr.rel (%p356) target = $region48
        $region47: #{tpu_custom_call.1} parent=43 // pred_region
          %s359 = sand.u32 %s99, 1
          %s360 = scalar_lea.sflag [#allocation4], %s359
          %s361 = sand.u32 %s99, 1
          %s362 = smul.addr %s361, 16
          %s363 = scalar_lea.vmem [#allocation7], %s362
          %364 = dma.done %s360, 256
        $region48: #{tpu_custom_call.1} parent=43 // pred_fallthru
          _
      $region44: #{tpu_custom_call.1} parent=5 // pred_fallthru
        _
    $region6: #{tpu_custom_call.1} parent=1 // loop_footer
      %s21 = sadd.s32 1, %s17
    $region7: #{tpu_custom_call.1} parent=1 // loop_footer_branch
      %16 = sbr.rel target = $region3
    $region8: #{tpu_custom_call.1} parent=1 // loop_exit
      _
    %365 = vsyncpa [#allocation3], 1
    %s366 = scalar_lea.sflag [#allocation3], 1
    %367 = vsyncpa %s366, 1
    %368 = vsyncpa [#allocation6], 1
    %s369 = scalar_lea.sflag [#allocation6], 1
    %370 = vsyncpa %s369, 1
    %371 = vsyncpa [#allocation4], 1
    %s372 = scalar_lea.sflag [#allocation4], 1
    %373 = vsyncpa %s372, 1

</llo_original>
